<compile_context>
chip_gen: v7x
topology: tpu7x:2x2x1
jax: 0.10.0
libtpu: 0.0.40
codegen_flags: <defaults>
</compile_context>

<pallas_src>
import functools

import jax
import jax.numpy as jnp
from jax import lax
from jax.experimental import pallas as pl
from jax.experimental.pallas import tpu as pltpu


def _f1_partial_kernel(x_ref, t_ref, out_ref, *, n_rows, tile_n):
    # x_ref: (TILE_N, C) logits, t_ref: (TILE_N, 1) int32 targets,
    # out_ref: (1, 2, C) per-tile partials  [row 0 = tp, row 1 = colsum(p)].
    i = pl.program_id(0)

    x = x_ref[...].astype(jnp.float32)                          # upcast in VMEM (bf16 streams cheaply)

    # Numerically stable softmax: one exp per element (EUP), one reciprocal per row (EUP),
    # one multiply per element (VPU) — no per-element divide.
    m = jnp.max(x, axis=-1, keepdims=True)                      # (T, 1)
    e = jnp.exp(x - m)                                          # (T, C)
    inv = pl.reciprocal(jnp.sum(e, axis=-1, keepdims=True), approx=False)  # (T, 1)
    p = e * inv                                                 # (T, C)

    if n_rows % tile_n != 0:
        # (T, 1) row-validity mask for the padded last tile; zeroing p here also discards any
        # NaN/Inf produced by uninitialized padded rows before the unmasked colsum below.
        row = lax.broadcasted_iota(jnp.int32, (x.shape[0], 1), 0) + i * tile_n
        p = jnp.where(row < n_rows, p, 0.0)

    t = t_ref[...]                                              # (T, 1) int32
    col = lax.broadcasted_iota(jnp.int32, x.shape, 1)           # (T, C)
    is_tgt = col == t                                           # bool one-hot mask (no f32 temp)

    tp = jnp.sum(jnp.where(is_tgt, p, 0.0), axis=0, keepdims=True)   # (1, C)
    colsum = jnp.sum(p, axis=0, keepdims=True)                       # (1, C)

    out_ref[...] = jnp.concatenate([tp, colsum], axis=0).reshape(out_ref.shape)


def f1_loss(y_pred, y_true, classes=18, epsilon=1e-7, tile_n=4096):
    """1 - mean macro-F1 over (N, C) logits and (N,) int targets (matches PyTorch F1Loss)."""
    assert y_pred.ndim == 2
    assert y_true.ndim == 1
    n, c = y_pred.shape
    assert classes == c, "one_hot width must match logits width (as in the PyTorch module)"

    # A tile equal to the full N is always a legal block; otherwise keep tile_n a multiple of 8.
    tile_n = min(tile_n, n)
    if tile_n < n:
        tile_n = max(8, (tile_n // 8) * 8)
    num_tiles = pl.cdiv(n, tile_n)
    t2 = y_true.reshape(n, 1).astype(jnp.int32)

    parts = pl.pallas_call(
        functools.partial(_f1_partial_kernel, n_rows=n, tile_n=tile_n),
        out_shape=jax.ShapeDtypeStruct((num_tiles, 2, c), jnp.float32),
        grid_spec=pltpu.PrefetchScalarGridSpec(
            num_scalar_prefetch=0,
            grid=(num_tiles,),
            in_specs=[
                pl.BlockSpec((tile_n, c), lambda i: (i, 0)),   # logits tile (auto double-buffered)
                pl.BlockSpec((tile_n, 1), lambda i: (i, 0)),   # targets tile
            ],
            out_specs=pl.BlockSpec((1, 2, c), lambda i: (i, 0, 0)),  # fused per-tile partials
        ),
        compiler_params=pltpu.CompilerParams(
            dimension_semantics=("parallel",),                 # independent tiles -> both v7x TCs
        ),
    )(y_pred, t2)

    # Tiny (C,)-sized finalize in plain JAX.
    tp = jnp.sum(parts[:, 0, :], axis=0)
    colsum = jnp.sum(parts[:, 1, :], axis=0)
    fp = colsum - tp                                              # (1-onehot)*p column sum
    class_count = jnp.bincount(y_true, length=classes).astype(jnp.float32)
    fn = class_count - tp                                         # onehot*(1-p) column sum

    precision = tp / (tp + fp + epsilon)
    recall = tp / (tp + fn + epsilon)
    f1 = 2.0 * (precision * recall) / (precision + recall + epsilon)
    f1 = jnp.clip(f1, epsilon, 1.0 - epsilon)
    return 1.0 - jnp.mean(f1)


def _f1_loss_ref(y_pred, y_true, classes=18, epsilon=1e-7):
    # Plain-JAX reference mirroring the PyTorch forward.
    y_true_oh = jax.nn.one_hot(y_true, classes, dtype=jnp.float32)
    p = jax.nn.softmax(y_pred.astype(jnp.float32), axis=1)
    tp = jnp.sum(y_true_oh * p, axis=0)
    fp = jnp.sum((1.0 - y_true_oh) * p, axis=0)
    fn = jnp.sum(y_true_oh * (1.0 - p), axis=0)
    precision = tp / (tp + fp + epsilon)
    recall = tp / (tp + fn + epsilon)
    f1 = 2.0 * (precision * recall) / (precision + recall + epsilon)
    f1 = jnp.clip(f1, epsilon, 1.0 - epsilon)
    return 1.0 - jnp.mean(f1)


if __name__ == "__main__":
    key = jax.random.PRNGKey(0)
    k1, k2 = jax.random.split(key)

    N, C = 80, 18                       # small demo; 18 classes as in the module default
    logits = jax.random.normal(k1, (N, C), dtype=jnp.float32)
    target = jax.random.randint(k2, (N,), 0, C, dtype=jnp.int32)

    ref = _f1_loss_ref(logits, target, classes=C)

    # tile_n=32 -> 3 row tiles, last one padded: exercises the grid + (T,1) row masking.
    loss_tiled = f1_loss(logits, target, classes=C, tile_n=32)
    jax.block_until_ready(loss_tiled)
    assert jnp.allclose(loss_tiled, ref, atol=1e-5, rtol=1e-5), (loss_tiled, ref)

    # Default tile size (clamps to N -> single full-array block).
    loss_full = f1_loss(logits, target, classes=C)
    jax.block_until_ready(loss_full)
    assert jnp.allclose(loss_full, ref, atol=1e-5, rtol=1e-5), (loss_full, ref)

    print("KERNEL_OK")
</pallas_src>

<mosaic_0001>
module attributes {stable_mosaic.version = 11 : i64} {
  func.func @_f1_partial_kernel(%arg0: i32, %arg1: memref<32x18xf32, #tpu.memory_space<vmem>>, %arg2: memref<32x1xi32, #tpu.memory_space<vmem>>, %arg3: memref<1x2x18xf32, #tpu.memory_space<vmem>>) attributes {dimension_semantics = [#tpu.dimension_semantics<parallel>], iteration_bounds = array<i64: 3>, scalar_prefetch = 0 : i64, scratch_operands = 0 : i64, tpu.core_type = #tpu.core_type<tc>, window_params = [{transform_indices = @transform_0, window_bounds = array<i64: 32, 18>}, {transform_indices = @transform_1, window_bounds = array<i64: 32, 1>}, {transform_indices = @transform_2, window_bounds = array<i64: 1, 2, 18>}]} {
    %c0 = arith.constant 0 : index
    %c0_0 = arith.constant 0 : index
    %0 = vector.load %arg1[%c0, %c0_0] : memref<32x18xf32, #tpu.memory_space<vmem>>, vector<32x18xf32>
    %cst = arith.constant dense<0xFF800000> : vector<32xf32>
    %1 = vector.multi_reduction <maximumf>, %0, %cst [1] : vector<32x18xf32> to vector<32xf32>
    %2 = vector.shape_cast %1 : vector<32xf32> to vector<32x1xf32>
    %3 = vector.broadcast %2 : vector<32x1xf32> to vector<32x18xf32>
    %4 = arith.subf %0, %3 : vector<32x18xf32>
    %5 = math.exp %4 : vector<32x18xf32>
    %cst_1 = arith.constant dense<0.000000e+00> : vector<32xf32>
    %6 = vector.multi_reduction <add>, %5, %cst_1 [1] : vector<32x18xf32> to vector<32xf32>
    %7 = vector.shape_cast %6 : vector<32xf32> to vector<32x1xf32>
    %8 = tpu.reciprocal %7 : vector<32x1xf32> -> vector<32x1xf32>
    %9 = vector.broadcast %8 : vector<32x1xf32> to vector<32x18xf32>
    %10 = arith.mulf %5, %9 : vector<32x18xf32>
    %11 = tpu.iota {dimensions = array<i32: 0>} : vector<32x1xi32>
    %c32_i32 = arith.constant 32 : i32
    %12 = arith.muli %arg0, %c32_i32 : i32
    %13 = vector.broadcast %12 : i32 to vector<32x1xi32>
    %14 = arith.addi %11, %13 : vector<32x1xi32>
    %c80_i32 = arith.constant 80 : i32
    %15 = vector.broadcast %c80_i32 : i32 to vector<32x1xi32>
    %16 = arith.cmpi slt, %14, %15 : vector<32x1xi32>
    %cst_2 = arith.constant 0.000000e+00 : f32
    %17 = vector.shape_cast %16 : vector<32x1xi1> to vector<32x1xi1>
    %18 = vector.broadcast %17 : vector<32x1xi1> to vector<32x18xi1>
    %19 = vector.broadcast %cst_2 : f32 to vector<32x18xf32>
    %20 = arith.select %18, %10, %19 : vector<32x18xi1>, vector<32x18xf32>
    %c0_3 = arith.constant 0 : index
    %c0_4 = arith.constant 0 : index
    %21 = vector.load %arg2[%c0_3, %c0_4] : memref<32x1xi32, #tpu.memory_space<vmem>>, vector<32x1xi32>
    %22 = tpu.iota {dimensions = array<i32: 1>} : vector<32x18xi32>
    %23 = vector.broadcast %21 : vector<32x1xi32> to vector<32x18xi32>
    %24 = arith.cmpi eq, %22, %23 : vector<32x18xi32>
    %cst_5 = arith.constant 0.000000e+00 : f32
    %25 = vector.broadcast %cst_5 : f32 to vector<32x18xf32>
    %26 = arith.select %24, %20, %25 : vector<32x18xi1>, vector<32x18xf32>
    %cst_6 = arith.constant dense<0.000000e+00> : vector<18xf32>
    %27 = vector.multi_reduction <add>, %26, %cst_6 [0] : vector<32x18xf32> to vector<18xf32>
    %28 = vector.shape_cast %27 : vector<18xf32> to vector<1x18xf32>
    %cst_7 = arith.constant dense<0.000000e+00> : vector<18xf32>
    %29 = vector.multi_reduction <add>, %20, %cst_7 [0] : vector<32x18xf32> to vector<18xf32>
    %30 = vector.shape_cast %29 : vector<18xf32> to vector<1x18xf32>
    %31 = tpu.concatenate %28, %30 in 0 : vector<1x18xf32>, vector<1x18xf32> -> vector<2x18xf32>
    %32 = vector.shape_cast %31 : vector<2x18xf32> to vector<1x2x18xf32>
    %c0_8 = arith.constant 0 : index
    %c0_9 = arith.constant 0 : index
    %c0_10 = arith.constant 0 : index
    %33 = vector.load %arg3[%c0_8, %c0_9, %c0_10] : memref<1x2x18xf32, #tpu.memory_space<vmem>>, vector<1x2x18xf32>
    tpu.vector_store %arg3[%c0_8, %c0_9, %c0_10], %32 {strides = array<i32>} : memref<1x2x18xf32, #tpu.memory_space<vmem>>, vector<1x2x18xf32>,
    return
  }
  func.func @transform_0(%arg0: i32) -> (i32, i32) {
    %c0_i32 = arith.constant 0 : i32
    %c0_i32_0 = arith.constant 0 : i32
    return %arg0, %c0_i32 : i32, i32
  }
  func.func @transform_1(%arg0: i32) -> (i32, i32) {
    %c0_i32 = arith.constant 0 : i32
    %c0_i32_0 = arith.constant 0 : i32
    return %arg0, %c0_i32 : i32, i32
  }
  func.func @transform_2(%arg0: i32) -> (i32, i32, i32) {
    %c0_i32 = arith.constant 0 : i32
    %c0_i32_0 = arith.constant 0 : i32
    %c0_i32_1 = arith.constant 0 : i32
    return %arg0, %c0_i32, %c0_i32_0 : i32, i32, i32
  }
}

</mosaic_0001>

<llo_original>
// kernel: tpu_custom_call.1
$region0: #{tpu_custom_call.1}
  #allocation0 [shape = 'u32[]', space=smem, size = 0x4, offset = 0x4, fixed_abs, tag = 'smem constant byte address 0x4 - core index']
  #allocation1 [shape = 'u32[144,128]{1,0:T(1,128)}', space=vmem, size = 0x12000, scoped, tag = 'internal scratch']
  %s0 = inlined_call_operand.vmem [shape: f32[80,18], index: 0, kind: input, shape index: {}]
  %s1 = inlined_call_operand.vmem [shape: s32[80,1], index: 1, kind: input, shape index: {}]
  %s2 = inlined_call_operand.hbm [shape: f32[3,2,18], index: 2, kind: output, shape index: {}]
  %s3 = sld [smem:[#allocation0]]
  $region41: #{tpu_custom_call.1} parent=0
    _
  %s5 = ssub.s32 1, %s3
  %s6 = scalar_select 0, %s5, %s3
  $region1: #{tpu_custom_call.1} parent=0
    #allocation2 [shape = 'u8[2048]{0}', space=vmem, size = 0x800, scoped, tag = 'output window, operand 0']
    #allocation3 [shape = 's32[2]{0}', space=sflag, size = 0x8, scoped, tag = 'scoped memory for tpu_custom_call.1']
    %7 = vsyncpa [#allocation3], 0
    %s8 = scalar_lea.sflag [#allocation3], 1
    %9 = vsyncpa %s8, 0
    loop: start=0, step=1, limit=5
    $region2: #{tpu_custom_call.1} parent=1 // loop_pre_header
      _
    $region3: #{tpu_custom_call.1} parent=1 // loop_header
      %s11 = sphi 0, %s15
      %p12 = scmp.ge.s32.totalorder %s11, 5
      %s21 = sphi 0, %s23
      %s24 = sphi 0, %s21
      %s25 = sphi 0, %s24
      %s41 = sphi 0, %s25
      %s47 = sphi 0, %s49
      %s50 = sphi 0, %s47
      %s51 = sphi 0, %s50
      %s67 = sphi 0, %s51
      %s73 = sphi 0, %s75
      %s76 = sphi 0, %s73
      %s77 = sphi 0, %s76
      %s93 = sphi 0, %s77
    $region4: #{tpu_custom_call.1} parent=1 // loop_header_branch
      %14 = sbr.rel (%p12) target = $region8
    $region5: #{tpu_custom_call.1} parent=1 // loop_body
      %s16 = ssub.s32 %s11, 1
      %s17 = ssub.s32 %s11, 2
      %s18 = sadd.s32 %s11, 1
      %s19 = ssub.s32 %s11, %s18
      %p20 = scmp.eq.s32.totalorder %s19, 0
      %s22 = sadd.s32 %s21, 1
      %s23 = scalar_select %p20, %s21, %s22
      %p26 = pneg %p20
      %p27 = scmp.eq.s32.totalorder %s11, 2
      %p28 = por %p26, %p27
      %p29 = scmp.ne.s32.totalorder %s21, %s24
      %p30 = scmp.eq.s32.totalorder %s11, 0
      %p31 = por %p29, %p30
      %p32 = scmp.ne.s32.totalorder %s21, %s24
      %p33 = scmp.eq.s32.totalorder %s16, 2
      %p34 = por %p32, %p33
      %p35 = scmp.ne.s32.totalorder %s24, %s25
      %p36 = scmp.eq.s32.totalorder %s16, 0
      %p37 = por %p35, %p36
      %p38 = scmp.ne.s32.totalorder %s24, %s25
      %p39 = scmp.eq.s32.totalorder %s17, 2
      %p40 = por %p38, %p39
      %p42 = scmp.ne.s32.totalorder %s25, %s41
      %p43 = scmp.eq.s32.totalorder %s17, 0
      %p44 = por %p42, %p43
      %s45 = ssub.s32 %s11, %s18
      %p46 = scmp.eq.s32.totalorder %s45, 0
      %s48 = sadd.s32 %s47, 1
      %s49 = scalar_select %p46, %s47, %s48
      %p52 = pneg %p46
      %p53 = scmp.eq.s32.totalorder %s11, 2
      %p54 = por %p52, %p53
      %p55 = scmp.ne.s32.totalorder %s47, %s50
      %p56 = scmp.eq.s32.totalorder %s11, 0
      %p57 = por %p55, %p56
      %p58 = scmp.ne.s32.totalorder %s47, %s50
      %p59 = scmp.eq.s32.totalorder %s16, 2
      %p60 = por %p58, %p59
      %p61 = scmp.ne.s32.totalorder %s50, %s51
      %p62 = scmp.eq.s32.totalorder %s16, 0
      %p63 = por %p61, %p62
      %p64 = scmp.ne.s32.totalorder %s50, %s51
      %p65 = scmp.eq.s32.totalorder %s17, 2
      %p66 = por %p64, %p65
      %p68 = scmp.ne.s32.totalorder %s51, %s67
      %p69 = scmp.eq.s32.totalorder %s17, 0
      %p70 = por %p68, %p69
      %s71 = ssub.s32 %s11, %s18
      %p72 = scmp.eq.s32.totalorder %s71, 0
      %s74 = sadd.s32 %s73, 1
      %s75 = scalar_select %p72, %s73, %s74
      %p78 = pneg %p72
      %p79 = scmp.eq.s32.totalorder %s11, 2
      %p80 = por %p78, %p79
      %p81 = scmp.ne.s32.totalorder %s73, %s76
      %p82 = scmp.eq.s32.totalorder %s11, 0
      %p83 = por %p81, %p82
      %p84 = scmp.ne.s32.totalorder %s73, %s76
      %p85 = scmp.eq.s32.totalorder %s16, 2
      %p86 = por %p84, %p85
      %p87 = scmp.ne.s32.totalorder %s76, %s77
      %p88 = scmp.eq.s32.totalorder %s16, 0
      %p89 = por %p87, %p88
      %p90 = scmp.ne.s32.totalorder %s76, %s77
      %p91 = scmp.eq.s32.totalorder %s17, 2
      %p92 = por %p90, %p91
      %p94 = scmp.ne.s32.totalorder %s77, %s93
      %p95 = scmp.eq.s32.totalorder %s17, 0
      %p96 = por %p94, %p95
      %p97 = scmp.le.s32.totalorder 1, %s11
      %p98 = scmp.lt.s32.totalorder %s11, 4
      %p99 = pnand %p97, %p98
      %p100 = pneg %p99
      // Predicated region
      $region9: #{tpu_custom_call.1} parent=5 // pred_check
        _
      $region10: #{tpu_custom_call.1} parent=5 // pred_check_branch
        %102 = sbr.rel (%p99) target = $region12
      $region11: #{tpu_custom_call.1} parent=5 // pred_region
        %s103 = ssub.s32 %s11, 1
      $region12: #{tpu_custom_call.1} parent=5 // pred_fallthru
        _
      %p104 = scmp.lt.s32.totalorder %s11, 3
      // Predicated region
      $region13: #{tpu_custom_call.1} parent=5 // pred_check
        %p105 = pneg %p104
      $region14: #{tpu_custom_call.1} parent=5 // pred_check_branch
        %107 = sbr.rel (%p105) target = $region16
      $region15: #{tpu_custom_call.1} parent=5 // pred_region
        // Predicated region
        $region17: #{tpu_custom_call.1} parent=15 // pred_check
          %p108 = pneg %p31
        $region18: #{tpu_custom_call.1} parent=15 // pred_check_branch
          %110 = sbr.rel (%p108) target = $region20
        $region19: #{tpu_custom_call.1} parent=15 // pred_region
          %s111 = smul.u32 4, %s11
          %s112 = ssub.s32 10, %s111
          %p113 = scmp.lt.s32.totalorder %s112, 4
          %s114 = scalar_select %p113, %s112, 4
          %s115 = smul.u32 128, %s114
          %p116 = scmp.lt.s32.totalorder %s111, 9
          %s117 = scalar_select %p116, %s111, 9
          %s118 = smul.addr %s117, 8
          %s119 = scalar_lea.vmem %s0, %s118
          %s120 = smul.u32 4, %s11
          %s121 = ssub.s32 10, %s120
          %p122 = scmp.lt.s32.totalorder %s121, 4
          %s123 = scalar_select %p122, %s121, 4
          %s124 = smul.u32 128, %s123
        $region20: #{tpu_custom_call.1} parent=15 // pred_fallthru
          _
        // Predicated region
        $region21: #{tpu_custom_call.1} parent=15 // pred_check
          %p125 = pneg %p57
        $region22: #{tpu_custom_call.1} parent=15 // pred_check_branch
          %127 = sbr.rel (%p125) target = $region24
        $region23: #{tpu_custom_call.1} parent=15 // pred_region
          %s128 = smul.u32 4, %s11
          %s129 = ssub.s32 10, %s128
          %p130 = scmp.lt.s32.totalorder %s129, 4
          %s131 = scalar_select %p130, %s129, 4
          %s132 = smul.u32 128, %s131
          %p133 = scmp.lt.s32.totalorder %s128, 9
          %s134 = scalar_select %p133, %s128, 9
          %s135 = smul.addr %s134, 8
          %s136 = scalar_lea.vmem %s1, %s135
          %s137 = smul.u32 4, %s11
          %s138 = ssub.s32 10, %s137
          %p139 = scmp.lt.s32.totalorder %s138, 4
          %s140 = scalar_select %p139, %s138, 4
          %s141 = smul.u32 128, %s140
        $region24: #{tpu_custom_call.1} parent=15 // pred_fallthru
          _
      $region16: #{tpu_custom_call.1} parent=5 // pred_fallthru
        _
      %p142 = scmp.le.s32.totalorder 1, %s11
      %p143 = scmp.lt.s32.totalorder %s11, 4
      %p144 = pnand %p142, %p143
      %p145 = pneg %p144
      // Predicated region
      $region25: #{tpu_custom_call.1} parent=5 // pred_check
        _
      $region26: #{tpu_custom_call.1} parent=5 // pred_check_branch
        %147 = sbr.rel (%p144) target = $region28
      $region27: #{tpu_custom_call.1} parent=5 // pred_region
        %s148 = ssub.s32 %s11, 1
        %s149 = smul.u32 4, %s16
        %s150 = ssub.s32 10, %s149
        %p151 = scmp.lt.s32.totalorder %s150, 4
        %s152 = scalar_select %p151, %s150, 4
        %s153 = smul.u32 128, %s152
        %p154 = scmp.lt.s32.totalorder %s149, 9
        %s155 = scalar_select %p154, %s149, 9
        %s156 = smul.addr %s155, 8
        %s157 = scalar_lea.vmem %s0, %s156
        %p158 = pneg %p37
        %p159 = pneg %p34
        %s160 = smul.u32 4, %s16
        %s161 = ssub.s32 10, %s160
        %p162 = scmp.lt.s32.totalorder %s161, 4
        %s163 = scalar_select %p162, %s161, 4
        %s164 = smul.u32 128, %s163
        %p165 = scmp.lt.s32.totalorder %s160, 9
        %s166 = scalar_select %p165, %s160, 9
        %s167 = smul.addr %s166, 8
        %s168 = scalar_lea.vmem %s1, %s167
        %p169 = pneg %p63
        %p170 = pneg %p60
        %p171 = pneg %p89
        %p172 = pneg %p86
        %s173 = sand.u32 %s76, 1
        %s174 = scalar_lea.sflag [#allocation3], %s173
        %s175 = sand.u32 %s76, 1
        %s176 = smul.addr %s175, 2
        %s177 = scalar_lea.vmem [#allocation2], %s176
        %s178 = smul.u32 4, %s16
        %s179 = ssub.s32 10, %s178
        %p180 = scmp.lt.s32.totalorder %s179, 4
        %s181 = scalar_select %p180, %s179, 4
        %s182 = smul.u32 128, %s181
        %p183 = scmp.lt.s32.totalorder %s178, 9
        %s184 = scalar_select %p183, %s178, 9
        %s185 = smul.addr %s184, 8
        %s186 = scalar_lea.vmem %s0, %s185
        %s187 = smul.u32 4, %s16
        %s188 = ssub.s32 10, %s187
        %p189 = scmp.lt.s32.totalorder %s188, 4
        %s190 = scalar_select %p189, %s188, 4
        %s191 = smul.u32 128, %s190
        %s192 = smul.u32 4, %s16
        %s193 = ssub.s32 10, %s192
        %p194 = scmp.lt.s32.totalorder %s193, 4
        %s195 = scalar_select %p194, %s193, 4
        %s196 = smul.u32 128, %s195
        %p197 = scmp.lt.s32.totalorder %s192, 9
        %s198 = scalar_select %p197, %s192, 9
        %s199 = smul.addr %s198, 8
        %s200 = scalar_lea.vmem %s1, %s199
        %s201 = smul.u32 4, %s16
        %s202 = ssub.s32 10, %s201
        %p203 = scmp.lt.s32.totalorder %s202, 4
        %s204 = scalar_select %p203, %s202, 4
        %s205 = smul.u32 128, %s204
        %v206 = vld [vmem:[%s186] sm:$0xff]
        %v207 = vld [vmem:[%s186 + $0x8] sm:$0xff]
        %v208 = vld [vmem:[%s186 + $0x10] sm:$0xff]
        %v209 = vld [vmem:[%s186 + $0x18] sm:$0xff]
        %vm210 = vcmask 146432
        %v211 = vsel %vm210, %v206, -inf
        %212 = vmax.xlane.f32.xlu0 %v211
        %v213 = vpop.xlane.xlu0 %212
        %v214 = vsel %vm210, %v207, -inf
        %215 = vmax.xlane.f32.xlu0 %v214
        %v216 = vpop.xlane.xlu0 %215
        %v217 = vsel %vm210, %v208, -inf
        %218 = vmax.xlane.f32.xlu0 %v217
        %v219 = vpop.xlane.xlu0 %218
        %v220 = vsel %vm210, %v209, -inf
        %221 = vmax.xlane.f32.xlu0 %v220
        %v222 = vpop.xlane.xlu0 %221
        %v223 = vsub.f32 %v206, %v213
        %v224 = vsub.f32 %v207, %v216
        %v225 = vsub.f32 %v208, %v219
        %v226 = vsub.f32 %v209, %v222
        %v227 = vmul.f32 %v223, 1.442695
        %v228 = vpow.pop %v227
        %v229 = vmul.f32 %v224, 1.442695
        %v230 = vpow.pop %v229
        %v231 = vmul.f32 %v225, 1.442695
        %v232 = vpow.pop %v231
        %v233 = vmul.f32 %v226, 1.442695
        %v234 = vpow.pop %v233
        %v235 = vsel %vm210, %v228, 0.0
        %236 = vadd.xlane.f32.xlu0 %v235
        %v237 = vpop.xlane.xlu0 %236
        %v238 = vsel %vm210, %v230, 0.0
        %239 = vadd.xlane.f32.xlu0 %v238
        %v240 = vpop.xlane.xlu0 %239
        %v241 = vsel %vm210, %v232, 0.0
        %242 = vadd.xlane.f32.xlu0 %v241
        %v243 = vpop.xlane.xlu0 %242
        %v244 = vsel %vm210, %v234, 0.0
        %245 = vadd.xlane.f32.xlu0 %v244
        %v246 = vpop.xlane.xlu0 %245
        %v247 = vrcp.pop %v237
        %v248 = vrcp.pop %v240
        %v249 = vrcp.pop %v243
        %v250 = vrcp.pop %v246
        %v251 = vmul.f32 %v228, %v247
        %v252 = vmul.f32 %v230, %v248
        %v253 = vmul.f32 %v232, %v249
        %v254 = vmul.f32 %v234, %v250
        %v255 = vlaneseq
        %v256 = vshrl.u32 %v255, 7
        %v257 = vadd.s32 %v256, 8
        %v258 = vadd.s32 %v256, 16
        %v259 = vadd.s32 %v256, 24
        %s260 = smul.u32 %s16, 32
        %v261 = vstv %s260
        %v262 = vadd.s32 %v256, %v261
        %v263 = vadd.s32 %v257, %v261
        %v264 = vadd.s32 %v258, %v261
        %v265 = vadd.s32 %v259, %v261
        %vm266 = vcmp.lt.s32.totalorder %v262, 80
        %vm267 = vcmp.lt.s32.totalorder %v263, 80
        %vm268 = vcmp.lt.s32.totalorder %v264, 80
        %vm269 = vcmp.lt.s32.totalorder %v265, 80
        %v270 = vsel %vm266, 1, 0
        %v271 = vsel %vm267, 1, 0
        %v272 = vsel %vm268, 1, 0
        %v273 = vsel %vm269, 1, 0
        %vm274 = vcmp.eq.s32.totalorder %v270, 1
        %vm275 = vcmp.eq.s32.totalorder %v271, 1
        %vm276 = vcmp.eq.s32.totalorder %v272, 1
        %vm277 = vcmp.eq.s32.totalorder %v273, 1
        %v278 = vsel %vm274, %v251, 0.0
        %v279 = vsel %vm275, %v252, 0.0
        %v280 = vsel %vm276, %v253, 0.0
        %v281 = vsel %vm277, %v254, 0.0
        %v282 = vld [vmem:[%s200] sm:$0xff]
        %v283 = vld [vmem:[%s200 + $0x8] sm:$0xff]
        %v284 = vld [vmem:[%s200 + $0x10] sm:$0xff]
        %v285 = vld [vmem:[%s200 + $0x18] sm:$0xff]
        %v286 = vlaneseq
        %v287 = vand.u32 %v286, 127
        %288 = vset.pattern.permute.xlu0 0
        %289 = vperm.xlu0 %288, %v282
        %v290 = vpop.permute.xlu0 %289
        %291 = vset.pattern.permute.xlu0 0
        %292 = vperm.xlu0 %291, %v283
        %v293 = vpop.permute.xlu0 %292
        %294 = vset.pattern.permute.xlu0 0
        %295 = vperm.xlu0 %294, %v284
        %v296 = vpop.permute.xlu0 %295
        %297 = vset.pattern.permute.xlu0 0
        %298 = vperm.xlu0 %297, %v285
        %v299 = vpop.permute.xlu0 %298
        %vm300 = vcmp.eq.s32.totalorder %v287, %v290
        %vm301 = vcmp.eq.s32.totalorder %v287, %v293
        %vm302 = vcmp.eq.s32.totalorder %v287, %v296
        %vm303 = vcmp.eq.s32.totalorder %v287, %v299
        %v304 = vsel %vm300, %v278, 0.0
        %v305 = vsel %vm301, %v279, 0.0
        %v306 = vsel %vm302, %v280, 0.0
        %v307 = vsel %vm303, %v281, 0.0
        %v308 = vsel %vm210, %v304, 0.0
        %v309 = vsel %vm210, %v305, 0.0
        %v310 = vadd.f32 %v308, %v309
        %v311 = vsel %vm210, %v306, 0.0
        %v312 = vadd.f32 %v310, %v311
        %v313 = vsel %vm210, %v307, 0.0
        %v314 = vadd.f32 %v312, %v313
        %v315 = vrot.slane %v314, 4
        %v316 = vadd.f32 %v314, %v315
        %v317 = vrot.slane %v316, 2
        %v318 = vadd.f32 %v316, %v317
        %v319 = vrot.slane %v318, 1
        %v320 = vadd.f32 %v318, %v319
        %v321 = vsel %vm210, %v278, 0.0
        %v322 = vsel %vm210, %v279, 0.0
        %v323 = vadd.f32 %v321, %v322
        %v324 = vsel %vm210, %v280, 0.0
        %v325 = vadd.f32 %v323, %v324
        %v326 = vsel %vm210, %v281, 0.0
        %v327 = vadd.f32 %v325, %v326
        %v328 = vrot.slane %v327, 4
        %v329 = vadd.f32 %v327, %v328
        %v330 = vrot.slane %v329, 2
        %v331 = vadd.f32 %v329, %v330
        %v332 = vrot.slane %v331, 1
        %v333 = vadd.f32 %v331, %v332
        %vm334 = vcmask 1040384
        %v335 = vsel %vm334, %v320, %v333
        %vm336 = vcmask 140288
        %337 = vst.msk [vmem:[%s177] sm:$0x3] %vm336, %v335
        %s338 = sand.u32 %s76, 1
        %s339 = scalar_lea.sflag [#allocation3], %s338
        %s340 = sand.u32 %s76, 1
        %s341 = smul.addr %s340, 2
        %s342 = scalar_lea.vmem [#allocation2], %s341
        // Predicated region
        $region29: #{tpu_custom_call.1} parent=27 // pred_check
          %p343 = pneg %p86
        $region30: #{tpu_custom_call.1} parent=27 // pred_check_branch
          %345 = sbr.rel (%p343) target = $region32
        $region31: #{tpu_custom_call.1} parent=27 // pred_region
          %s347 = ssub.s32 32, 32
          %348 = vsyncadd %s339, %s347
          %s349 = smul.addr %s16, 32
          %s350 = scalar_lea.hbm %s2, %s349
          %s352 = sshll.u32 %s342, 4
          %s353 = int_to_ptr.vmem [resolvable:$true] %s352
          %355 = dma.vmem_to_hbm [thread:$0]  %s353, 32, %s350, %s339
        $region32: #{tpu_custom_call.1} parent=27 // pred_fallthru
          _
      $region28: #{tpu_custom_call.1} parent=5 // pred_fallthru
        _
      %p356 = scmp.le.s32.totalorder 2, %s11
      // Predicated region
      $region33: #{tpu_custom_call.1} parent=5 // pred_check
        %p357 = pneg %p356
      $region34: #{tpu_custom_call.1} parent=5 // pred_check_branch
        %359 = sbr.rel (%p357) target = $region36
      $region35: #{tpu_custom_call.1} parent=5 // pred_region
        %s360 = ssub.s32 %s11, 2
        // Predicated region
        $region37: #{tpu_custom_call.1} parent=35 // pred_check
          %p361 = pneg %p92
        $region38: #{tpu_custom_call.1} parent=35 // pred_check_branch
          %363 = sbr.rel (%p361) target = $region40
        $region39: #{tpu_custom_call.1} parent=35 // pred_region
          %s364 = sand.u32 %s77, 1
          %s365 = scalar_lea.sflag [#allocation3], %s364
          %s366 = sand.u32 %s77, 1
          %s367 = smul.addr %s366, 2
          %s368 = scalar_lea.vmem [#allocation2], %s367
          %369 = dma.done %s365, 32
        $region40: #{tpu_custom_call.1} parent=35 // pred_fallthru
          _
      $region36: #{tpu_custom_call.1} parent=5 // pred_fallthru
        _
    $region6: #{tpu_custom_call.1} parent=1 // loop_footer
      %s15 = sadd.s32 1, %s11
    $region7: #{tpu_custom_call.1} parent=1 // loop_footer_branch
      %10 = sbr.rel target = $region3
    $region8: #{tpu_custom_call.1} parent=1 // loop_exit
      _
    %370 = vsyncpa [#allocation3], 1
    %s371 = scalar_lea.sflag [#allocation3], 1
    %372 = vsyncpa %s371, 1

</llo_original>
